<compile_context>
chip_gen: v5e
topology: v5e:2x2
jax: 0.10.0
libtpu: 0.0.40
codegen_flags: <defaults>
</compile_context>

<pallas_src>
import functools

import jax
import jax.numpy as jnp
from jax.experimental import pallas as pl
from jax.experimental.pallas import tpu as pltpu

EPS = 1e-5

# VMEM sizing (bytes): tile budget covers 2x double-buffered input + output at
# the storage dtype plus ~2 live f32 working copies of the tile in the body.
_TILE_VMEM_BUDGET = 24 * 1024 * 1024
_VMEM_LIMIT_BYTES = 48 * 1024 * 1024  # <= v7x 64 MiB physical, > v5e 16 MiB default


def _round_up(x, m):
    return ((x + m - 1) // m) * m


def _adain_kernel(x_ref, smean_ref, sstd_ref, o_ref, *, eps, hw):
    # x_ref / o_ref: (tm, HW) tile; smean_ref / sstd_ref: matching (tm, 1) tiles.
    x = x_ref[...].astype(jnp.float32)

    # Two-pass mean/var: numerically robust, both passes stay in VMEM/vregs.
    mean = jnp.sum(x, axis=-1, keepdims=True) * (1.0 / hw)
    diff = x - mean
    # Unbiased variance (torch.var default correction=1); HW == 1 degenerates
    # to NaN exactly like torch.var on a single element.
    inv_hwm1 = (1.0 / (hw - 1)) if hw > 1 else float("nan")
    var = jnp.sum(diff * diff, axis=-1, keepdims=True) * inv_hwm1 + eps
    std = jnp.sqrt(var)

    # Per-row (tm, 1) divide fused with the style scale -> the (tm, HW) tile
    # only sees one multiply-add sweep.
    scale = sstd_ref[...].astype(jnp.float32) / (std + eps)
    shift = smean_ref[...].astype(jnp.float32)
    o_ref[...] = (diff * scale + shift).astype(o_ref.dtype)


def simple_single_transform(content_feat, style_mean_code, style_std_code, eps=EPS):
    """content_feat: (N, C, H, W); style_*_code broadcastable to (N, C, 1, 1)."""
    N, C, H, W = content_feat.shape
    NC, HW = N * C, H * W
    dtype = content_feat.dtype
    itemsize = jnp.dtype(dtype).itemsize
    # Sublane packing minimum for the storage dtype (8 f32 / 16 bf16 / 32 int8).
    sub = max(8, 32 // max(itemsize, 1))

    x2d = content_feat.reshape(NC, HW)
    smean2d = jnp.broadcast_to(style_mean_code, (N, C, 1, 1)).reshape(NC, 1)
    sstd2d = jnp.broadcast_to(style_std_code, (N, C, 1, 1)).reshape(NC, 1)

    # --- row tile: largest VMEM-budgeted multiple of `sub` --------------------
    per_row_bytes = HW * (4 * itemsize + 2 * 4)
    budget_rows = max(sub, (_TILE_VMEM_BUDGET // per_row_bytes) // sub * sub)
    tm = min(_round_up(NC, sub), budget_rows)
    # Keep >= 2 grid steps when NC allows it (dual-TC sharding + pipelining).
    if NC > sub and tm >= NC:
        tm = _round_up((NC + 1) // 2, sub)
    grid = ((NC + tm - 1) // tm,)

    kernel = functools.partial(_adain_kernel, eps=eps, hw=HW)

    out2d = pl.pallas_call(
        kernel,
        out_shape=jax.ShapeDtypeStruct((NC, HW), dtype),
        grid_spec=pltpu.PrefetchScalarGridSpec(
            num_scalar_prefetch=0,
            grid=grid,
            in_specs=[
                # (tm, HW): HW equals the full spatial extent -> lane-dense tiles.
                pl.BlockSpec((tm, HW), lambda i: (i, 0)),
                # Per-tile style-code slices (last dim 1 == full array dim).
                pl.BlockSpec((tm, 1), lambda i: (i, 0)),
                pl.BlockSpec((tm, 1), lambda i: (i, 0)),
            ],
            out_specs=pl.BlockSpec((tm, HW), lambda i: (i, 0)),
        ),
        compiler_params=pltpu.CompilerParams(
            dimension_semantics=("parallel",),
            vmem_limit_bytes=_VMEM_LIMIT_BYTES,
        ),
    )(x2d, smean2d, sstd2d)

    # TODO(synk): for extremely large spatial extents (a single (sub, HW) tile
    # exceeding the VMEM budget), a second grid axis over HW with a stats +
    # normalize two-pass would be needed; not required for typical
    # style-transfer feature maps.
    return out2d.reshape(N, C, H, W)


def _reference(content_feat, style_mean_code, style_std_code, eps=EPS):
    N, C, H, W = content_feat.shape
    flat = content_feat.reshape(N, C, -1).astype(jnp.float32)
    mean = flat.mean(axis=2).reshape(N, C, 1, 1)
    var = flat.var(axis=2, ddof=1).reshape(N, C, 1, 1) + eps
    std = jnp.sqrt(var)
    out = (content_feat.astype(jnp.float32) - mean) / (std + eps)
    return out * style_std_code + style_mean_code


if __name__ == "__main__":
    key = jax.random.PRNGKey(0)
    k1, k2, k3 = jax.random.split(key, 3)

    N, C, H, W = 2, 4, 16, 16
    content = jax.random.normal(k1, (N, C, H, W), dtype=jnp.float32)
    style_mean = jax.random.normal(k2, (N, C, 1, 1), dtype=jnp.float32)
    style_std = jax.random.uniform(k3, (N, C, 1, 1), dtype=jnp.float32) + 0.5

    out = simple_single_transform(content, style_mean, style_std)
    out = jax.block_until_ready(out)

    ref = _reference(content, style_mean, style_std)
    assert out.shape == (N, C, H, W)
    assert jnp.allclose(out, ref, atol=1e-4, rtol=1e-4), "mismatch vs reference"

    print("KERNEL_OK")
</pallas_src>

<mosaic_0001>
module attributes {stable_mosaic.version = 11 : i64} {
  func.func @_adain_kernel(%arg0: i32, %arg1: memref<8x256xf32, #tpu.memory_space<vmem>>, %arg2: memref<8x1xf32, #tpu.memory_space<vmem>>, %arg3: memref<8x1xf32, #tpu.memory_space<vmem>>, %arg4: memref<8x256xf32, #tpu.memory_space<vmem>>) attributes {dimension_semantics = [#tpu.dimension_semantics<parallel>], iteration_bounds = array<i64: 1>, scalar_prefetch = 0 : i64, scratch_operands = 0 : i64, tpu.core_type = #tpu.core_type<tc>, window_params = [{transform_indices = @transform_0, window_bounds = array<i64: 8, 256>}, {transform_indices = @transform_1, window_bounds = array<i64: 8, 1>}, {transform_indices = @transform_2, window_bounds = array<i64: 8, 1>}, {transform_indices = @transform_3, window_bounds = array<i64: 8, 256>}]} {
    %c0 = arith.constant 0 : index
    %c0_0 = arith.constant 0 : index
    %0 = vector.load %arg1[%c0, %c0_0] : memref<8x256xf32, #tpu.memory_space<vmem>>, vector<8x256xf32>
    %cst = arith.constant dense<0.000000e+00> : vector<8xf32>
    %1 = vector.multi_reduction <add>, %0, %cst [1] : vector<8x256xf32> to vector<8xf32>
    %2 = vector.shape_cast %1 : vector<8xf32> to vector<8x1xf32>
    %cst_1 = arith.constant 3.906250e-03 : f32
    %3 = vector.broadcast %cst_1 : f32 to vector<8x1xf32>
    %4 = arith.mulf %2, %3 : vector<8x1xf32>
    %5 = vector.broadcast %4 : vector<8x1xf32> to vector<8x256xf32>
    %6 = arith.subf %0, %5 : vector<8x256xf32>
    %7 = arith.mulf %6, %6 : vector<8x256xf32>
    %cst_2 = arith.constant dense<0.000000e+00> : vector<8xf32>
    %8 = vector.multi_reduction <add>, %7, %cst_2 [1] : vector<8x256xf32> to vector<8xf32>
    %9 = vector.shape_cast %8 : vector<8xf32> to vector<8x1xf32>
    %cst_3 = arith.constant 0.00392156886 : f32
    %10 = vector.broadcast %cst_3 : f32 to vector<8x1xf32>
    %11 = arith.mulf %9, %10 : vector<8x1xf32>
    %cst_4 = arith.constant 9.99999974E-6 : f32
    %12 = vector.broadcast %cst_4 : f32 to vector<8x1xf32>
    %13 = arith.addf %11, %12 : vector<8x1xf32>
    %14 = math.sqrt %13 : vector<8x1xf32>
    %c0_5 = arith.constant 0 : index
    %c0_6 = arith.constant 0 : index
    %15 = vector.load %arg3[%c0_5, %c0_6] : memref<8x1xf32, #tpu.memory_space<vmem>>, vector<8x1xf32>
    %cst_7 = arith.constant 9.99999974E-6 : f32
    %16 = vector.broadcast %cst_7 : f32 to vector<8x1xf32>
    %17 = arith.addf %14, %16 : vector<8x1xf32>
    %18 = arith.divf %15, %17 : vector<8x1xf32>
    %c0_8 = arith.constant 0 : index
    %c0_9 = arith.constant 0 : index
    %19 = vector.load %arg2[%c0_8, %c0_9] : memref<8x1xf32, #tpu.memory_space<vmem>>, vector<8x1xf32>
    %20 = vector.broadcast %18 : vector<8x1xf32> to vector<8x256xf32>
    %21 = arith.mulf %6, %20 : vector<8x256xf32>
    %22 = vector.broadcast %19 : vector<8x1xf32> to vector<8x256xf32>
    %23 = arith.addf %21, %22 : vector<8x256xf32>
    %c0_10 = arith.constant 0 : index
    %c0_11 = arith.constant 0 : index
    %24 = vector.load %arg4[%c0_10, %c0_11] : memref<8x256xf32, #tpu.memory_space<vmem>>, vector<8x256xf32>
    tpu.vector_store %arg4[%c0_10, %c0_11], %23 {strides = array<i32>} : memref<8x256xf32, #tpu.memory_space<vmem>>, vector<8x256xf32>,
    return
  }
  func.func @transform_0(%arg0: i32) -> (i32, i32) {
    %c0_i32 = arith.constant 0 : i32
    %c0_i32_0 = arith.constant 0 : i32
    return %arg0, %c0_i32 : i32, i32
  }
  func.func @transform_1(%arg0: i32) -> (i32, i32) {
    %c0_i32 = arith.constant 0 : i32
    %c0_i32_0 = arith.constant 0 : i32
    return %arg0, %c0_i32 : i32, i32
  }
  func.func @transform_2(%arg0: i32) -> (i32, i32) {
    %c0_i32 = arith.constant 0 : i32
    %c0_i32_0 = arith.constant 0 : i32
    return %arg0, %c0_i32 : i32, i32
  }
  func.func @transform_3(%arg0: i32) -> (i32, i32) {
    %c0_i32 = arith.constant 0 : i32
    %c0_i32_0 = arith.constant 0 : i32
    return %arg0, %c0_i32 : i32, i32
  }
}

</mosaic_0001>

<llo_original>
// kernel: tpu_custom_call.1
$region0: #{tpu_custom_call.1}
  #allocation0 [shape = 'u32[]', space=smem, size = 0x4, offset = 0x4, fixed_abs, tag = 'smem constant byte address 0x4 - core index']
  #allocation1 [shape = 'u32[72,128]{1,0:T(1,128)}', space=vmem, size = 0x9000, scoped, tag = 'internal scratch']
  %s0 = inlined_call_operand.vmem [shape: f32[8,256], index: 0, kind: input, shape index: {}]
  %s1 = inlined_call_operand.vmem [shape: f32[8,1], index: 1, kind: input, shape index: {}]
  %s2 = inlined_call_operand.vmem [shape: f32[8,1], index: 2, kind: input, shape index: {}]
  %s3 = inlined_call_operand.hbm [shape: f32[8,256], index: 3, kind: output, shape index: {}]
  %s4 = sld [smem:[#allocation0]]
  $region22: #{tpu_custom_call.1} parent=0
    _
  %s6 = ssub.s32 1, %s4
  %s7 = scalar_select 0, %s6, %s4
  $region1: #{tpu_custom_call.1} parent=0
    #allocation2 [shape = 'u8[8192]{0}', space=vmem, size = 0x2000, scoped, tag = 'output window, operand 0, single buffered']
    #allocation3 [shape = 's32[1]{0}', space=sflag, size = 0x4, scoped, tag = 'scoped memory for tpu_custom_call.1']
    %8 = vsyncpa [#allocation3], 0
    // Predicated region
    $region2: #{tpu_custom_call.1} parent=1 // pred_check
      _
    $region3: #{tpu_custom_call.1} parent=1 // pred_check_branch
      %10 = sbr.rel (0) target = $region5
    $region4: #{tpu_custom_call.1} parent=1 // pred_region
      _
    $region5: #{tpu_custom_call.1} parent=1 // pred_fallthru
      _
    // Predicated region
    $region6: #{tpu_custom_call.1} parent=1 // pred_check
      _
    $region7: #{tpu_custom_call.1} parent=1 // pred_check_branch
      %12 = sbr.rel (0) target = $region9
    $region8: #{tpu_custom_call.1} parent=1 // pred_region
      _
    $region9: #{tpu_custom_call.1} parent=1 // pred_fallthru
      _
    // Predicated region
    $region10: #{tpu_custom_call.1} parent=1 // pred_check
      _
    $region11: #{tpu_custom_call.1} parent=1 // pred_check_branch
      %14 = sbr.rel (0) target = $region13
    $region12: #{tpu_custom_call.1} parent=1 // pred_region
      _
    $region13: #{tpu_custom_call.1} parent=1 // pred_fallthru
      _
    %v15 = vld [vmem:[%s0] sm:$0xff]
    %v16 = vld [vmem:[%s0 + $0x8] sm:$0xff]
    %v17 = vadd.f32 %v15, %v16
    %18 = vadd.xlane.f32.xlu0 %v17
    %v19 = vpop.xlane.xlu0 %18
    %v20 = vmul.f32 %v19, 0.00390625
    %v21 = vsub.f32 %v15, %v20
    %v22 = vsub.f32 %v16, %v20
    %v23 = vmul.f32 %v21, %v21
    %v24 = vmul.f32 %v22, %v22
    %v25 = vadd.f32 %v23, %v24
    %26 = vadd.xlane.f32.xlu0 %v25
    %v27 = vpop.xlane.xlu0 %26
    %v28 = vmul.f32 %v27, 0.003921569
    %v29 = vadd.f32 %v28, 1e-05
    %v30 = vrsqrt.pop %v29
    %v31 = vmul.f32 %v30, %v29
    %v32 = vmul.f32 %v31, %v30
    %v33 = vmul.f32 0.5, %v32
    %v34 = vsub.f32 1.5, %v33
    %v35 = vmul.f32 %v30, %v34
    %v36 = vmul.f32 %v29, %v35
    %vm37 = vcmp.eq.f32.partialorder %v29, inf
    %v38 = vsel %vm37, %v29, %v36
    %vm39 = vcmp.eq.f32.partialorder %v29, 0.0
    %v40 = vand.u32 %v29, 2147483648
    %v41 = vsel %vm39, %v40, %v38
    %v42 = vld [vmem:[%s2] sm:$0xff]
    %v43 = vadd.f32 %v41, 1e-05
    %v44 = vrcp.pop %v43
    %v45 = vmul.f32 %v43, %v44
    %v46 = vsub.f32 1.0, %v45
    %v47 = vmul.f32 %v44, %v46
    %v48 = vadd.f32 %v44, %v47
    %vm49 = vweird.f32 %v43
    %vm50 = vweird.f32 %v44
    %vm51 = vmor %vm49, %vm50
    %v52 = vsel %vm51, %v44, %v48
    %v53 = vand.u32 2147483647, %v43
    %vm54 = vcmp.eq.f32.partialorder %v53, 8.507059e+37
    %v55 = vand.u32 %v43, 2147483648
    %v56 = vor.u32 1.1754944e-38, %v55
    %v57 = vsel %vm54, %v56, %v52
    %v58 = vmul.f32 %v42, %v57
    %v59 = vld [vmem:[%s1] sm:$0xff]
    %61 = vset.pattern.permute.xlu0 0
    %62 = vperm.xlu0 %61, %v58
    %v63 = vpop.permute.xlu0 %62
    %v65 = vmul.f32 %v21, %v63
    %v66 = vmul.f32 %v22, %v63
    %68 = vset.pattern.permute.xlu0 0
    %69 = vperm.xlu0 %68, %v59
    %v70 = vpop.permute.xlu0 %69
    %v72 = vadd.f32 %v65, %v70
    %v73 = vadd.f32 %v66, %v70
    %74 = vst [vmem:[#allocation2] sm:$0xff] %v72
    %75 = vst [vmem:[#allocation2 + $0x8] sm:$0xff] %v73
    // Predicated region
    $region14: #{tpu_custom_call.1} parent=1 // pred_check
      _
    $region15: #{tpu_custom_call.1} parent=1 // pred_check_branch
      %77 = sbr.rel (0) target = $region17
    $region16: #{tpu_custom_call.1} parent=1 // pred_region
      %79 = vsyncadd [#allocation3], 0
      %s81 = sshll.u32 [#allocation2], 4
      %s82 = int_to_ptr.vmem [resolvable:$true] %s81
      %s83 = sshll.u32 %s3, 4
      %s84 = int_to_ptr.hbm [resolvable:$true] %s83
      %86 = dma.vmem_to_hbm [thread:$0]  %s82, 256, %s84, [#allocation3]
    $region17: #{tpu_custom_call.1} parent=1 // pred_fallthru
      _
    // Predicated region
    $region18: #{tpu_custom_call.1} parent=1 // pred_check
      _
    $region19: #{tpu_custom_call.1} parent=1 // pred_check_branch
      %88 = sbr.rel (0) target = $region21
    $region20: #{tpu_custom_call.1} parent=1 // pred_region
      %90 = dma.done [#allocation3], 256
    $region21: #{tpu_custom_call.1} parent=1 // pred_fallthru
      _
    %91 = vsyncpa [#allocation3], 1

</llo_original>
